<compile_context>
chip_gen: v5e
topology: v5e:2x2
jax: 0.10.0
libtpu: 0.0.40
codegen_flags: <defaults>
</compile_context>

<pallas_src>
import jax
import jax.numpy as jnp
from jax.experimental import pallas as pl
from jax.experimental.pallas import tpu as pltpu

_MIB = 1024 * 1024


# ----------------------------- helpers -----------------------------------------

def _round_up(x, m):
    return (x + m - 1) // m * m


def _pick_tile(dim, target, align):
    """Largest multiple of `align` that divides `dim` and is <= target (or the full dim)."""
    if dim <= target:
        return dim
    t = (target // align) * align
    while t >= align:
        if dim % t == 0:
            return t
        t -= align
    return dim


def _row_tiling(n, *, align=16, full=128, target=256):
    """Pad a row count and pick a row tile.

    Tiles are multiples of 16 (bf16 packs 16 rows per vreg); when n is large we pad up to a
    multiple of 128 and use full MXU-height tiles (256 when it divides, else 128) instead of
    letting a prime-ish n force a tiny or full-dim tile."""
    if n <= full:
        t = _round_up(n, align)
        return t, t
    n_pad = _round_up(n, full)
    tile = target if n_pad % target == 0 else full
    return n_pad, tile


def _vmem_capacity_bytes():
    try:
        return int(pltpu.get_tpu_info().vmem_capacity_bytes)
    except Exception:
        return 64 * _MIB  # conservative fallback (v7x per-TensorCore VMEM)


# ----------------------------- stage 1: ResBlocks -------------------------------

def resblock_kernel(h_ref, rw_ref, rb_ref, x_ref, acc_ref):
    # Grid = (NH, M_pad // tm1, L); L is the innermost "arbitrary" axis.
    # h_ref : (tm1, H)       hidden rows, native dtype (shared across heads/layers)
    # rw_ref: (1, 1, H, H)   ONE layer's ResBlock weight, bf16, (in, out) layout
    # rb_ref: (1, 1, 1, H)   ONE layer's ResBlock bias, f32
    # x_ref : (1, tm1, H)    bf16 output block (resident across L, written on last layer)
    # acc_ref: (tm1, H)      f32 scratch carrying x across the L axis
    l = pl.program_id(2)

    @pl.when(l == 0)
    def _():
        acc_ref[...] = h_ref[...].astype(jnp.float32)  # in-kernel upcast; hidden stays native in HBM

    x = acc_ref[...]
    # bf16 operands on the MXU, f32 accumulation.
    y = jnp.dot(x.astype(jnp.bfloat16), rw_ref[0, 0],
                preferred_element_type=jnp.float32)
    y = y + rb_ref[0, 0]
    x = x + y * jax.nn.sigmoid(y)  # residual + SiLU, f32 elementwise (v5e has no bf16 VPU/EUP)
    acc_ref[...] = x

    @pl.when(l == pl.num_programs(2) - 1)
    def _():
        x_ref[0] = x.astype(x_ref.dtype)


# ----------------------------- stage 2: lm_head ---------------------------------

def lmhead_kernel(x_ref, w_ref, o_ref):
    # x_ref: (TM, H) bf16 ResBlock outputs (all heads stacked along rows)
    # w_ref: (H, TV) bf16 lm_head tile
    # o_ref: (TM, TV) logits tile (default bf16; f32 accumulation inside)
    o_ref[...] = jnp.dot(x_ref[...], w_ref[...],
                         preferred_element_type=jnp.float32).astype(o_ref.dtype)


# ----------------------------- wrapper -------------------------------------------

def medusa_forward(hidden, res_w, res_b, lm_w, *, tm1=None, tm=None, tv=None,
                   out_dtype=jnp.bfloat16):
    """hidden: [B, S, H]; res_w: [NH, L, H, H] (in,out); res_b: [NH, L, 1, H]; lm_w: [H, V].
    Returns medusa logits [NH, B, S, V] in `out_dtype` (default bf16; accumulation is f32)."""
    B, S, H = hidden.shape
    NH, L = res_w.shape[:2]
    V = lm_w.shape[1]
    M = B * S

    vmem_cap = _vmem_capacity_bytes()
    vmem_limit = (vmem_cap // 8) * 7  # ~112 MiB on v5e/v6e (128 MiB phys), ~56 MiB on v7x (64 MiB)

    rw_bf16 = res_w.astype(jnp.bfloat16)
    rb_f32 = res_b.astype(jnp.float32)
    lw_bf16 = lm_w.astype(jnp.bfloat16)
    # TODO(synk): optional int8 lm_w (v5e/v6e MXU) or fp8 (v7x; no int datapath) would halve the
    # HBM-bound weight stream but changes numerics / Medusa acceptance -- kept bf16 here.

    # ---- stage 1: per-head ResBlock stacks -> x_all [NH, M_pad, H] (bf16) ----
    if tm1 is None:
        M_pad, tm1 = _row_tiling(M, target=256)
    else:
        assert tm1 % 16 == 0, "tm1 must be a multiple of 16 (bf16 sublane packing)"
        M_pad = _round_up(M, tm1)

    h2 = hidden.reshape(M, H)
    if M_pad != M:
        h2 = jnp.pad(h2, ((0, M_pad - M), (0, 0)))

    in_bytes = jnp.dtype(hidden.dtype).itemsize
    x_all = pl.pallas_call(
        resblock_kernel,
        out_shape=jax.ShapeDtypeStruct((NH, M_pad, H), jnp.bfloat16),
        grid_spec=pltpu.PrefetchScalarGridSpec(
            num_scalar_prefetch=0,
            grid=(NH, M_pad // tm1, L),
            in_specs=[
                pl.BlockSpec((tm1, H), lambda h, m, l: (m, 0)),             # hidden rows
                pl.BlockSpec((1, 1, H, H), lambda h, m, l: (h, l, 0, 0)),   # one layer's weight
                pl.BlockSpec((1, 1, 1, H), lambda h, m, l: (h, l, 0, 0)),   # one layer's bias
            ],
            out_specs=pl.BlockSpec((1, tm1, H), lambda h, m, l: (h, m, 0)),
            scratch_shapes=[pltpu.VMEM((tm1, H), jnp.float32)],             # carries x across L
        ),
        compiler_params=pltpu.CompilerParams(
            dimension_semantics=("parallel", "parallel", "arbitrary"),
            vmem_limit_bytes=vmem_limit,
        ),
        cost_estimate=pl.CostEstimate(
            flops=int(2 * NH * L * M_pad * H * H + 4 * NH * L * M_pad * H),
            transcendentals=int(NH * L * M_pad * H),
            bytes_accessed=int(NH * M_pad * H * in_bytes
                               + NH * L * (M_pad // tm1) * H * H * 2
                               + NH * L * H * 4
                               + NH * M_pad * H * 2),
        ),
    )(h2, rw_bf16, rb_f32)

    # ---- stage 2: all heads' rows through the shared lm_head in one tiled matmul ----
    NHM = NH * M
    if tm is None:
        NHM_pad, tm = _row_tiling(NHM, target=256)
    else:
        assert tm % 16 == 0, "tm must be a multiple of 16 (bf16 sublane packing)"
        NHM_pad = _round_up(NHM, tm)

    x_flat = (x_all[:, :M] if M_pad != M else x_all).reshape(NHM, H)
    if NHM_pad != NHM:
        x_flat = jnp.pad(x_flat, ((0, NHM_pad - NHM), (0, 0)))

    out_bytes = jnp.dtype(out_dtype).itemsize
    if tv is None:
        # Generation-aware vocab tile: big tv cuts x_flat re-reads and per-step overhead on the
        # HBM-bound lm_w stream.  Budget = double-buffered W + out tiles + double-buffered x tile.
        budget = int(0.85 * vmem_limit) - 4 * tm * H
        tv_cap = max(128, budget // (4 * H + 2 * tm * out_bytes))
        tv_target = 8192 if vmem_cap >= 96 * _MIB else 4096      # 128 MiB parts vs v7x 64 MiB
        tv_target = max(128, min(tv_target, (tv_cap // 128) * 128))
        tv = _pick_tile(V, tv_target, 128)
    assert V % tv == 0, "tv must divide the vocab size"

    logits = pl.pallas_call(
        lmhead_kernel,
        out_shape=jax.ShapeDtypeStruct((NHM_pad, V), out_dtype),
        grid_spec=pltpu.PrefetchScalarGridSpec(
            num_scalar_prefetch=0,
            # V is the slow/outer axis: each lm_w tile is DMA'd once and reused across
            # every row block (all heads x all tokens).
            grid=(V // tv, NHM_pad // tm),
            in_specs=[
                pl.BlockSpec((tm, H), lambda v, m: (m, 0)),   # ResBlock outputs
                pl.BlockSpec((H, tv), lambda v, m: (0, v)),   # lm_head tile (shared)
            ],
            out_specs=pl.BlockSpec((tm, tv), lambda v, m: (m, v)),
        ),
        compiler_params=pltpu.CompilerParams(
            dimension_semantics=("parallel", "parallel"),
            vmem_limit_bytes=vmem_limit,
        ),
        cost_estimate=pl.CostEstimate(
            flops=int(2 * NHM_pad * H * V),
            transcendentals=0,
            bytes_accessed=int((V // tv) * NHM_pad * H * 2     # x_flat re-read once per vocab tile
                               + H * V * 2
                               + NHM_pad * V * out_bytes),
        ),
    )(x_flat, lw_bf16)

    if NHM_pad != NHM:
        logits = logits[:NHM]
    return logits.reshape(NH, B, S, V)


# ----------------------------- pure-JAX reference ---------------------------------

def medusa_forward_ref(hidden, res_w, res_b, lm_w):
    """Pure-JAX f32 reference with the module's semantics (for correctness check)."""
    B, S, H = hidden.shape
    NH, L = res_w.shape[:2]
    x0 = hidden.reshape(B * S, H).astype(jnp.float32)
    outs = []
    for h in range(NH):
        x = x0
        for l in range(L):
            y = x @ res_w[h, l] + res_b[h, l]
            x = x + y * jax.nn.sigmoid(y)
        outs.append(x @ lm_w)
    return jnp.stack(outs, axis=0).reshape(NH, B, S, lm_w.shape[1])


if __name__ == "__main__":
    # Small, layout-friendly shapes consistent with the module (medusa_num_heads=4).
    # S=9 deliberately exercises the row-padding / slicing paths; NUM_LAYERS=2 exercises
    # the layer-carry grid axis.
    B, S, H, V = 2, 9, 128, 256
    NUM_HEADS, NUM_LAYERS = 4, 2

    key = jax.random.PRNGKey(0)
    k_h, k_w, k_b, k_lm = jax.random.split(key, 4)

    # Deterministic synthetic parameters.  NOTE: the PyTorch __init__ zero-inits the
    # ResBlock linear weight; small random values are used here so the kernel exercises
    # a non-trivial matmul path (shapes match the module exactly).
    hidden_states = jax.random.normal(k_h, (B, S, H), dtype=jnp.float32)
    res_w = 0.02 * jax.random.normal(k_w, (NUM_HEADS, NUM_LAYERS, H, H), dtype=jnp.float32)
    res_b = 0.02 * jax.random.normal(k_b, (NUM_HEADS, NUM_LAYERS, 1, H), dtype=jnp.float32)
    lm_w = 0.02 * jax.random.normal(k_lm, (H, V), dtype=jnp.float32)  # lm_head: no bias

    ref = medusa_forward_ref(hidden_states, res_w, res_b, lm_w)

    # 1) explicit small tiles -> multi-tile stage-2 grid (row padding 72 -> 96, 2 vocab tiles)
    medusa_logits = medusa_forward(hidden_states, res_w, res_b, lm_w, tm=32, tv=128)
    jax.block_until_ready(medusa_logits)
    assert medusa_logits.shape == (NUM_HEADS, B, S, V)
    # bf16 matmul operands + bf16 logits (f32 accumulation) => loosened tolerance vs f32 ref.
    assert jnp.allclose(medusa_logits.astype(jnp.float32), ref, atol=2.5e-2, rtol=2.5e-2), \
        "mismatch vs reference (explicit tiles)"

    # 2) fully automatic (generation-aware) tiling path
    medusa_logits_auto = medusa_forward(hidden_states, res_w, res_b, lm_w)
    jax.block_until_ready(medusa_logits_auto)
    assert medusa_logits_auto.shape == (NUM_HEADS, B, S, V)
    assert jnp.allclose(medusa_logits_auto.astype(jnp.float32), ref, atol=2.5e-2, rtol=2.5e-2), \
        "mismatch vs reference (auto tiles)"

    # TODO(synk): the frozen Gemma-2 base model (outputs[0]), tokenizer, and the
    # medusa_generate tree-decoding loop are not re-implemented; hidden_states stands in
    # for the base model output, as the Medusa heads + lm_head are the hot path.
    print("KERNEL_OK")
</pallas_src>

<mosaic_0001>
module attributes {stable_mosaic.version = 11 : i64} {
  func.func @resblock_kernel(%arg0: i32, %arg1: i32, %arg2: i32, %arg3: memref<32x128xf32, #tpu.memory_space<vmem>>, %arg4: memref<1x1x128x128xbf16, #tpu.memory_space<vmem>>, %arg5: memref<1x1x1x128xf32, #tpu.memory_space<vmem>>, %arg6: memref<1x32x128xbf16, #tpu.memory_space<vmem>>, %arg7: memref<32x128xf32, #tpu.memory_space<vmem>>) attributes {dimension_semantics = [#tpu.dimension_semantics<parallel>, #tpu.dimension_semantics<parallel>, #tpu.dimension_semantics<arbitrary>], iteration_bounds = array<i64: 4, 1, 2>, scalar_prefetch = 0 : i64, scratch_operands = 1 : i64, tpu.core_type = #tpu.core_type<tc>, window_params = [{transform_indices = @transform_0, window_bounds = array<i64: 32, 128>}, {transform_indices = @transform_1, window_bounds = array<i64: 1, 1, 128, 128>}, {transform_indices = @transform_2, window_bounds = array<i64: 1, 1, 1, 128>}, {transform_indices = @transform_3, window_bounds = array<i64: 1, 32, 128>}]} {
    %c0_i32 = arith.constant 0 : i32
    %0 = arith.cmpi eq, %arg2, %c0_i32 : i32
    %1 = arith.extui %0 : i1 to i32
    %c0_i32_0 = arith.constant 0 : i32
    %2 = arith.cmpi ne, %1, %c0_i32_0 : i32
    scf.if %2 {
      %c0_14 = arith.constant 0 : index
      %c0_15 = arith.constant 0 : index
      %23 = vector.load %arg3[%c0_14, %c0_15] : memref<32x128xf32, #tpu.memory_space<vmem>>, vector<32x128xf32>
      %c0_16 = arith.constant 0 : index
      %c0_17 = arith.constant 0 : index
      %24 = vector.load %arg7[%c0_16, %c0_17] : memref<32x128xf32, #tpu.memory_space<vmem>>, vector<32x128xf32>
      tpu.vector_store %arg7[%c0_16, %c0_17], %23 {strides = array<i32>} : memref<32x128xf32, #tpu.memory_space<vmem>>, vector<32x128xf32>,
    } else {
    }
    %c0 = arith.constant 0 : index
    %c0_1 = arith.constant 0 : index
    %3 = vector.load %arg7[%c0, %c0_1] : memref<32x128xf32, #tpu.memory_space<vmem>>, vector<32x128xf32>
    %4 = arith.truncf %3 : vector<32x128xf32> to vector<32x128xbf16>
    %c0_2 = arith.constant 0 : index
    %c0_3 = arith.constant 0 : index
    %c0_4 = arith.constant 0 : index
    %c0_5 = arith.constant 0 : index
    %5 = vector.load %arg4[%c0_2, %c0_3, %c0_4, %c0_5] : memref<1x1x128x128xbf16, #tpu.memory_space<vmem>>, vector<1x1x128x128xbf16>
    %6 = vector.shape_cast %5 : vector<1x1x128x128xbf16> to vector<128x128xbf16>
    %cst = arith.constant dense<0.000000e+00> : vector<32x128xf32>
    %7 = tpu.matmul %4, %6, %cst {dimension_numbers = #tpu.dot_dimension_numbers<[1], [0], [0], [1], [0, 0, 1, 1], [], []>} : vector<32x128xbf16>, vector<128x128xbf16>, vector<32x128xf32> -> vector<32x128xf32>
    %c0_6 = arith.constant 0 : index
    %c0_7 = arith.constant 0 : index
    %c0_8 = arith.constant 0 : index
    %c0_9 = arith.constant 0 : index
    %8 = vector.load %arg5[%c0_6, %c0_7, %c0_8, %c0_9] : memref<1x1x1x128xf32, #tpu.memory_space<vmem>>, vector<1x1x1x128xf32>
    %9 = vector.shape_cast %8 : vector<1x1x1x128xf32> to vector<1x128xf32>
    %10 = vector.broadcast %9 : vector<1x128xf32> to vector<32x128xf32>
    %11 = arith.addf %7, %10 : vector<32x128xf32>
    %12 = arith.negf %11 : vector<32x128xf32>
    %13 = math.exp %12 : vector<32x128xf32>
    %cst_10 = arith.constant 1.000000e+00 : f32
    %14 = vector.broadcast %cst_10 : f32 to vector<32x128xf32>
    %15 = arith.addf %14, %13 : vector<32x128xf32>
    %16 = arith.divf %14, %15 : vector<32x128xf32>
    %17 = arith.mulf %11, %16 : vector<32x128xf32>
    %18 = arith.addf %3, %17 : vector<32x128xf32>
    %c0_11 = arith.constant 0 : index
    %c0_12 = arith.constant 0 : index
    %19 = vector.load %arg7[%c0_11, %c0_12] : memref<32x128xf32, #tpu.memory_space<vmem>>, vector<32x128xf32>
    tpu.vector_store %arg7[%c0_11, %c0_12], %18 {strides = array<i32>} : memref<32x128xf32, #tpu.memory_space<vmem>>, vector<32x128xf32>,
    %c1_i32 = arith.constant 1 : i32
    %20 = arith.cmpi eq, %arg2, %c1_i32 : i32
    %21 = arith.extui %20 : i1 to i32
    %c0_i32_13 = arith.constant 0 : i32
    %22 = arith.cmpi ne, %21, %c0_i32_13 : i32
    scf.if %22 {
      %23 = arith.truncf %18 : vector<32x128xf32> to vector<32x128xbf16>
      %c0_14 = arith.constant 0 : index
      %c0_15 = arith.constant 0 : index
      %c0_16 = arith.constant 0 : index
      %24 = vector.load %arg6[%c0_14, %c0_15, %c0_16] : memref<1x32x128xbf16, #tpu.memory_space<vmem>>, vector<1x32x128xbf16>
      %25 = vector.shape_cast %24 : vector<1x32x128xbf16> to vector<32x128xbf16>
      %26 = vector.shape_cast %23 : vector<32x128xbf16> to vector<1x32x128xbf16>
      tpu.vector_store %arg6[%c0_14, %c0_15, %c0_16], %26 {strides = array<i32>} : memref<1x32x128xbf16, #tpu.memory_space<vmem>>, vector<1x32x128xbf16>,
    } else {
    }
    return
  }
  func.func @transform_0(%arg0: i32, %arg1: i32, %arg2: i32) -> (i32, i32) {
    %c0_i32 = arith.constant 0 : i32
    %c0_i32_0 = arith.constant 0 : i32
    return %arg1, %c0_i32 : i32, i32
  }
  func.func @transform_1(%arg0: i32, %arg1: i32, %arg2: i32) -> (i32, i32, i32, i32) {
    %c0_i32 = arith.constant 0 : i32
    %c0_i32_0 = arith.constant 0 : i32
    %c0_i32_1 = arith.constant 0 : i32
    return %arg0, %arg2, %c0_i32, %c0_i32_0 : i32, i32, i32, i32
  }
  func.func @transform_2(%arg0: i32, %arg1: i32, %arg2: i32) -> (i32, i32, i32, i32) {
    %c0_i32 = arith.constant 0 : i32
    %c0_i32_0 = arith.constant 0 : i32
    %c0_i32_1 = arith.constant 0 : i32
    return %arg0, %arg2, %c0_i32, %c0_i32_0 : i32, i32, i32, i32
  }
  func.func @transform_3(%arg0: i32, %arg1: i32, %arg2: i32) -> (i32, i32, i32) {
    %c0_i32 = arith.constant 0 : i32
    %c0_i32_0 = arith.constant 0 : i32
    return %arg0, %arg1, %c0_i32 : i32, i32, i32
  }
}

</mosaic_0001>

<llo_original>
// kernel: tpu_custom_call.1
$region0: #{tpu_custom_call.1}
  #allocation0 [shape = 'u32[]', space=smem, size = 0x4, offset = 0x4, fixed_abs, tag = 'smem constant byte address 0x4 - core index']
  #allocation1 [shape = 'u32[72,128]{1,0:T(1,128)}', space=vmem, size = 0x9000, scoped, tag = 'internal scratch']
  #allocation2 [shape = 'f32[32,128]{1,0:T(8,128)}', space=vmem, size = 0x4000, scoped, tag = 'scratch operand']
  %s0 = inlined_call_operand.hbm [shape: f32[32,128], index: 0, kind: input, shape index: {}]
  %s1 = inlined_call_operand.hbm [shape: bf16[4,2,128,128], index: 1, kind: input, shape index: {}]
  %s2 = inlined_call_operand.hbm [shape: f32[4,2,1,128], index: 2, kind: input, shape index: {}]
  %s3 = inlined_call_operand.hbm [shape: bf16[4,32,128], index: 3, kind: output, shape index: {}]
  %s4 = sld [smem:[#allocation0]]
  $region65: #{tpu_custom_call.1} parent=0
    _
  %s6 = ssub.s32 1, %s4
  %s7 = scalar_select 0, %s6, %s4
  $region1: #{tpu_custom_call.1} parent=0
    #allocation3 [shape = 'u8[16384]{0}', space=vmem, size = 0x4000, scoped, tag = 'input window, operand 0, single buffered']
    #allocation4 [shape = 's32[2]{0}', space=sflag, size = 0x8, scoped, tag = 'scoped memory for tpu_custom_call.1']
    #allocation5 [shape = 's32[2]{0}', space=sflag, size = 0x8, scoped, tag = 'scoped memory for tpu_custom_call.1']
    #allocation6 [shape = 'u8[65536]{0}', space=vmem, size = 0x10000, scoped, tag = 'input window, operand 1']
    #allocation7 [shape = 's32[2]{0}', space=sflag, size = 0x8, scoped, tag = 'scoped memory for tpu_custom_call.1']
    #allocation8 [shape = 'u8[1024]{0}', space=vmem, size = 0x400, scoped, tag = 'input window, operand 2']
    #allocation9 [shape = 'u8[16384]{0}', space=vmem, size = 0x4000, scoped, tag = 'output window, operand 0']
    %8 = vsyncpa [#allocation4], 0
    %9 = vsyncpa [#allocation7], 0
    %s10 = scalar_lea.sflag [#allocation7], 1
    %11 = vsyncpa %s10, 0
    %12 = vsyncpa [#allocation5], 0
    %s13 = scalar_lea.sflag [#allocation5], 1
    %14 = vsyncpa %s13, 0
    loop: start=0, step=1, limit=10
    $region2: #{tpu_custom_call.1} parent=1 // loop_pre_header
      _
    $region3: #{tpu_custom_call.1} parent=1 // loop_header
      %s16 = sphi 0, %s20
      %p17 = scmp.ge.s32.totalorder %s16, 10
      %s23 = sphi 0, %s42
      %s24 = sphi 0, %s38
      %s25 = sphi 0, %s34
      %s26 = sphi 0, %s23
      %s27 = sphi 0, %s24
      %s28 = sphi 0, %s25
      %s29 = sphi 0, %s26
      %s30 = sphi 0, %s27
      %s31 = sphi 0, %s28
      %s45 = sphi 0, %s47
      %s48 = sphi 0, %s45
      %s49 = sphi 0, %s48
      %s65 = sphi 0, %s49
      %s73 = sphi 0, %s75
      %s76 = sphi 0, %s73
      %s77 = sphi 0, %s76
      %s93 = sphi 0, %s77
      %s101 = sphi 0, %s103
      %s104 = sphi 0, %s101
      %s105 = sphi 0, %s104
      %s121 = sphi 0, %s105
      %s129 = sphi 0, %s131
      %s132 = sphi 0, %s129
      %s133 = sphi 0, %s132
      %s149 = sphi 0, %s133
    $region4: #{tpu_custom_call.1} parent=1 // loop_header_branch
      %19 = sbr.rel (%p17) target = $region8
    $region5: #{tpu_custom_call.1} parent=1 // loop_body
      %s21 = ssub.s32 %s16, 1
      %s22 = ssub.s32 %s16, 2
      %s32 = sadd.s32 1, %s25
      %p33 = scmp.ge.s32.totalorder %s32, 2
      %s34 = scalar_select %p33, 0, %s32
      %s35 = sadd.s32 1, %s24
      %s36 = scalar_select %p33, %s35, %s24
      %p37 = scmp.ge.s32.totalorder %s36, 1
      %s38 = scalar_select %p37, 0, %s36
      %s39 = sadd.s32 1, %s23
      %s40 = scalar_select %p37, %s39, %s23
      %p41 = scmp.ge.s32.totalorder %s40, 4
      %s42 = scalar_select %p41, 0, %s40
      %s43 = ssub.s32 %s24, %s38
      %p44 = scmp.eq.s32.totalorder %s43, 0
      %s46 = sadd.s32 %s45, 1
      %s47 = scalar_select %p44, %s45, %s46
      %p50 = pneg %p44
      %p51 = scmp.eq.s32.totalorder %s16, 7
      %p52 = por %p50, %p51
      %p53 = scmp.ne.s32.totalorder %s45, %s48
      %p54 = scmp.eq.s32.totalorder %s16, 0
      %p55 = por %p53, %p54
      %p56 = scmp.ne.s32.totalorder %s45, %s48
      %p57 = scmp.eq.s32.totalorder %s21, 7
      %p58 = por %p56, %p57
      %p59 = scmp.ne.s32.totalorder %s48, %s49
      %p60 = scmp.eq.s32.totalorder %s21, 0
      %p61 = por %p59, %p60
      %p62 = scmp.ne.s32.totalorder %s48, %s49
      %p63 = scmp.eq.s32.totalorder %s22, 7
      %p64 = por %p62, %p63
      %p66 = scmp.ne.s32.totalorder %s49, %s65
      %p67 = scmp.eq.s32.totalorder %s22, 0
      %p68 = por %p66, %p67
      %s69 = ssub.s32 %s23, %s42
      %s70 = ssub.s32 %s25, %s34
      %s71 = sor.u32 %s69, %s70
      %p72 = scmp.eq.s32.totalorder %s71, 0
      %s74 = sadd.s32 %s73, 1
      %s75 = scalar_select %p72, %s73, %s74
      %p78 = pneg %p72
      %p79 = scmp.eq.s32.totalorder %s16, 7
      %p80 = por %p78, %p79
      %p81 = scmp.ne.s32.totalorder %s73, %s76
      %p82 = scmp.eq.s32.totalorder %s16, 0
      %p83 = por %p81, %p82
      %p84 = scmp.ne.s32.totalorder %s73, %s76
      %p85 = scmp.eq.s32.totalorder %s21, 7
      %p86 = por %p84, %p85
      %p87 = scmp.ne.s32.totalorder %s76, %s77
      %p88 = scmp.eq.s32.totalorder %s21, 0
      %p89 = por %p87, %p88
      %p90 = scmp.ne.s32.totalorder %s76, %s77
      %p91 = scmp.eq.s32.totalorder %s22, 7
      %p92 = por %p90, %p91
      %p94 = scmp.ne.s32.totalorder %s77, %s93
      %p95 = scmp.eq.s32.totalorder %s22, 0
      %p96 = por %p94, %p95
      %s97 = ssub.s32 %s23, %s42
      %s98 = ssub.s32 %s25, %s34
      %s99 = sor.u32 %s97, %s98
      %p100 = scmp.eq.s32.totalorder %s99, 0
      %s102 = sadd.s32 %s101, 1
      %s103 = scalar_select %p100, %s101, %s102
      %p106 = pneg %p100
      %p107 = scmp.eq.s32.totalorder %s16, 7
      %p108 = por %p106, %p107
      %p109 = scmp.ne.s32.totalorder %s101, %s104
      %p110 = scmp.eq.s32.totalorder %s16, 0
      %p111 = por %p109, %p110
      %p112 = scmp.ne.s32.totalorder %s101, %s104
      %p113 = scmp.eq.s32.totalorder %s21, 7
      %p114 = por %p112, %p113
      %p115 = scmp.ne.s32.totalorder %s104, %s105
      %p116 = scmp.eq.s32.totalorder %s21, 0
      %p117 = por %p115, %p116
      %p118 = scmp.ne.s32.totalorder %s104, %s105
      %p119 = scmp.eq.s32.totalorder %s22, 7
      %p120 = por %p118, %p119
      %p122 = scmp.ne.s32.totalorder %s105, %s121
      %p123 = scmp.eq.s32.totalorder %s22, 0
      %p124 = por %p122, %p123
      %s125 = ssub.s32 %s23, %s42
      %s126 = ssub.s32 %s24, %s38
      %s127 = sor.u32 %s125, %s126
      %p128 = scmp.eq.s32.totalorder %s127, 0
      %s130 = sadd.s32 %s129, 1
      %s131 = scalar_select %p128, %s129, %s130
      %p134 = pneg %p128
      %p135 = scmp.eq.s32.totalorder %s16, 7
      %p136 = por %p134, %p135
      %p137 = scmp.ne.s32.totalorder %s129, %s132
      %p138 = scmp.eq.s32.totalorder %s16, 0
      %p139 = por %p137, %p138
      %p140 = scmp.ne.s32.totalorder %s129, %s132
      %p141 = scmp.eq.s32.totalorder %s21, 7
      %p142 = por %p140, %p141
      %p143 = scmp.ne.s32.totalorder %s132, %s133
      %p144 = scmp.eq.s32.totalorder %s21, 0
      %p145 = por %p143, %p144
      %p146 = scmp.ne.s32.totalorder %s132, %s133
      %p147 = scmp.eq.s32.totalorder %s22, 7
      %p148 = por %p146, %p147
      %p150 = scmp.ne.s32.totalorder %s133, %s149
      %p151 = scmp.eq.s32.totalorder %s22, 0
      %p152 = por %p150, %p151
      %p153 = scmp.le.s32.totalorder 1, %s16
      %p154 = scmp.lt.s32.totalorder %s16, 9
      %p155 = pnand %p153, %p154
      %p156 = pneg %p155
      // Predicated region
      $region9: #{tpu_custom_call.1} parent=5 // pred_check
        _
      $region10: #{tpu_custom_call.1} parent=5 // pred_check_branch
        %158 = sbr.rel (%p155) target = $region12
      $region11: #{tpu_custom_call.1} parent=5 // pred_region
        %s159 = ssub.s32 %s16, 1
        // Predicated region
        $region13: #{tpu_custom_call.1} parent=11 // pred_check
          %p160 = pneg %p61
        $region14: #{tpu_custom_call.1} parent=11 // pred_check_branch
          %162 = sbr.rel (%p160) target = $region16
        $region15: #{tpu_custom_call.1} parent=11 // pred_region
          %s163 = smul.u32 4, %s27
          %165 = vsyncadd [#allocation4], 0
          %s166 = smul.addr %s163, 8
          %s167 = scalar_lea.hbm %s0, %s166
          %s168 = sshll.u32 %s167, 4
          %s169 = int_to_ptr.hbm [resolvable:$true] %s168
          %s170 = sshll.u32 [#allocation3], 4
          %s171 = int_to_ptr.vmem [resolvable:$true] %s170
          %176 = dma.hbm_to_vmem [thread:$0]  %s169, 512, %s171, [#allocation4], 128, 128, 8
        $region16: #{tpu_custom_call.1} parent=11 // pred_fallthru
          _
      $region12: #{tpu_custom_call.1} parent=5 // pred_fallthru
        _
      %p177 = scmp.lt.s32.totalorder %s16, 8
      // Predicated region
      $region17: #{tpu_custom_call.1} parent=5 // pred_check
        %p178 = pneg %p177
      $region18: #{tpu_custom_call.1} parent=5 // pred_check_branch
        %180 = sbr.rel (%p178) target = $region20
      $region19: #{tpu_custom_call.1} parent=5 // pred_region
        // Predicated region
        $region21: #{tpu_custom_call.1} parent=19 // pred_check
          %p181 = pneg %p83
        $region22: #{tpu_custom_call.1} parent=19 // pred_check_branch
          %183 = sbr.rel (%p181) target = $region24
        $region23: #{tpu_custom_call.1} parent=19 // pred_region
          %s184 = sand.u32 %s16, 1
          %s185 = scalar_lea.sflag [#allocation7], %s184
          %s186 = sand.u32 %s73, 1
          %s187 = smul.addr %s186, 64
          %s188 = scalar_lea.vmem [#allocation6], %s187
          %190 = vsyncadd %s185, 0
          %s191 = smul.addr %s25, 16
          %s192 = smul.addr %s23, 32
          %s193 = sadd.s32 %s191, %s192
          %s194 = smul.addr %s193, 4
          %s195 = scalar_lea.hbm %s1, %s194
          %s196 = sshll.u32 %s195, 4
          %s197 = int_to_ptr.hbm [resolvable:$true] %s196
          %s198 = sshll.u32 %s188, 4
          %s199 = int_to_ptr.vmem [resolvable:$true] %s198
          %204 = dma.hbm_to_vmem [thread:$0]  %s197, 1024, %s199, %s185, 64, 64, 4
        $region24: #{tpu_custom_call.1} parent=19 // pred_fallthru
          _
        // Predicated region
        $region25: #{tpu_custom_call.1} parent=19 // pred_check
          %p205 = pneg %p111
        $region26: #{tpu_custom_call.1} parent=19 // pred_check_branch
          %207 = sbr.rel (%p205) target = $region28
        $region27: #{tpu_custom_call.1} parent=19 // pred_region
          %s208 = sand.u32 %s16, 1
          %s209 = scalar_lea.sflag [#allocation7], %s208
          %s210 = sand.u32 %s101, 1
          %s211 = scalar_lea.vmem [#allocation8], %s210
          %213 = vsyncadd %s209, 0
          %s214 = smul.addr %s23, 2
          %s215 = sadd.s32 %s25, %s214
          %s216 = scalar_lea.hbm %s2, %s215
          %s218 = sshll.u32 %s216, 4
          %s219 = int_to_ptr.hbm [resolvable:$true] %s218
          %s220 = sshll.u32 %s211, 4
          %s221 = int_to_ptr.vmem [resolvable:$true] %s220
          %223 = dma.hbm_to_vmem [thread:$0]  %s219, 16, %s221, %s209
        $region28: #{tpu_custom_call.1} parent=19 // pred_fallthru
          _
      $region20: #{tpu_custom_call.1} parent=5 // pred_fallthru
        _
      %p224 = scmp.le.s32.totalorder 1, %s16
      %p225 = scmp.lt.s32.totalorder %s16, 9
      %p226 = pnand %p224, %p225
      %p227 = pneg %p226
      // Predicated region
      $region29: #{tpu_custom_call.1} parent=5 // pred_check
        _
      $region30: #{tpu_custom_call.1} parent=5 // pred_check_branch
        %229 = sbr.rel (%p226) target = $region32
      $region31: #{tpu_custom_call.1} parent=5 // pred_region
        %s230 = ssub.s32 %s16, 1
        // Predicated region
        $region33: #{tpu_custom_call.1} parent=31 // pred_check
          %p231 = pneg %p61
        $region34: #{tpu_custom_call.1} parent=31 // pred_check_branch
          %233 = sbr.rel (%p231) target = $region36
        $region35: #{tpu_custom_call.1} parent=31 // pred_region
          %235 = dma.done [#allocation4], 512
        $region36: #{tpu_custom_call.1} parent=31 // pred_fallthru
          _
        %s236 = sand.u32 %s21, 1
        %s237 = scalar_lea.sflag [#allocation7], %s236
        %s238 = sand.u32 %s76, 1
        %s239 = smul.addr %s238, 64
        %s240 = scalar_lea.vmem [#allocation6], %s239
        // Predicated region
        $region37: #{tpu_custom_call.1} parent=31 // pred_check
          %p241 = pneg %p89
        $region38: #{tpu_custom_call.1} parent=31 // pred_check_branch
          %243 = sbr.rel (%p241) target = $region40
        $region39: #{tpu_custom_call.1} parent=31 // pred_region
          %245 = dma.done %s237, 1024
        $region40: #{tpu_custom_call.1} parent=31 // pred_fallthru
          _
        %s246 = sand.u32 %s21, 1
        %s247 = scalar_lea.sflag [#allocation7], %s246
        %s248 = sand.u32 %s104, 1
        %s249 = scalar_lea.vmem [#allocation8], %s248
        // Predicated region
        $region41: #{tpu_custom_call.1} parent=31 // pred_check
          %p250 = pneg %p117
        $region42: #{tpu_custom_call.1} parent=31 // pred_check_branch
          %252 = sbr.rel (%p250) target = $region44
        $region43: #{tpu_custom_call.1} parent=31 // pred_region
          %254 = dma.done %s247, 16
        $region44: #{tpu_custom_call.1} parent=31 // pred_fallthru
          _
        %p255 = pneg %p61
        %p256 = pneg %p58
        %s257 = sand.u32 %s21, 1
        %s258 = scalar_lea.sflag [#allocation7], %s257
        %s259 = sand.u32 %s76, 1
        %s260 = smul.addr %s259, 64
        %s261 = scalar_lea.vmem [#allocation6], %s260
        %p262 = pneg %p89
        %p263 = pneg %p86
        %s264 = sand.u32 %s21, 1
        %s265 = scalar_lea.sflag [#allocation7], %s264
        %s266 = sand.u32 %s104, 1
        %s267 = scalar_lea.vmem [#allocation8], %s266
        %p268 = pneg %p117
        %p269 = pneg %p114
        %p270 = pneg %p145
        %p271 = pneg %p142
        %s272 = sand.u32 %s132, 1
        %s273 = scalar_lea.sflag [#allocation5], %s272
        %s274 = sand.u32 %s132, 1
        %s275 = smul.addr %s274, 16
        %s276 = scalar_lea.vmem [#allocation9], %s275
        %s277 = smul.u32 4, %s27
        %s278 = smul.u32 4, %s27
        %p279 = scmp.eq.s32.totalorder %s28, 0
        // Predicated region
        $region45: #{tpu_custom_call.1} parent=31 // pred_check
          %p280 = pneg %p279
        $region46: #{tpu_custom_call.1} parent=31 // pred_check_branch
          %282 = sbr.rel (%p280) target = $region48
        $region47: #{tpu_custom_call.1} parent=31 // pred_region
          %v283 = vld [vmem:[#allocation3] sm:$0xff]
          %v284 = vld [vmem:[#allocation3 + $0x8] sm:$0xff]
          %v285 = vld [vmem:[#allocation3 + $0x10] sm:$0xff]
          %v286 = vld [vmem:[#allocation3 + $0x18] sm:$0xff]
          %287 = vst [vmem:[#allocation2] sm:$0xff] %v283
          %288 = vst [vmem:[#allocation2 + $0x8] sm:$0xff] %v284
          %289 = vst [vmem:[#allocation2 + $0x10] sm:$0xff] %v285
          %290 = vst [vmem:[#allocation2 + $0x18] sm:$0xff] %v286
        $region48: #{tpu_custom_call.1} parent=31 // pred_fallthru
          _
        %v291 = vld [vmem:[#allocation2] sm:$0xff]
        %v292 = vld [vmem:[#allocation2 + $0x8] sm:$0xff]
        %v293 = vld [vmem:[#allocation2 + $0x10] sm:$0xff]
        %v294 = vld [vmem:[#allocation2 + $0x18] sm:$0xff]
        %v295 = vpack.c.bf16 %v292, %v291
        %v296 = vpack.c.bf16 %v294, %v293
        %v297 = vld [vmem:[%s240] sm:$0xf]
        %v298 = vld [vmem:[%s240 + $0x4] sm:$0xf]
        %v299 = vld [vmem:[%s240 + $0x8] sm:$0xf]
        %v300 = vld [vmem:[%s240 + $0xc] sm:$0xf]
        %v301 = vld [vmem:[%s240 + $0x10] sm:$0xf]
        %v302 = vld [vmem:[%s240 + $0x14] sm:$0xf]
        %v303 = vld [vmem:[%s240 + $0x18] sm:$0xf]
        %v304 = vld [vmem:[%s240 + $0x1c] sm:$0xf]
        %v305 = vld [vmem:[%s240 + $0x20] sm:$0xf]
        %v306 = vld [vmem:[%s240 + $0x24] sm:$0xf]
        %v307 = vld [vmem:[%s240 + $0x28] sm:$0xf]
        %v308 = vld [vmem:[%s240 + $0x2c] sm:$0xf]
        %v309 = vld [vmem:[%s240 + $0x30] sm:$0xf]
        %v310 = vld [vmem:[%s240 + $0x34] sm:$0xf]
        %v311 = vld [vmem:[%s240 + $0x38] sm:$0xf]
        %v312 = vld [vmem:[%s240 + $0x3c] sm:$0xf]
        %v313 = vld [vmem:[%s249] sm:$0x1]
        %v315 = vperm.slane %v313, 0
        %v333 = vunpack.c.l.b16 %v297
        %v334 = vunpack.c.l.b16 %v298
        %v335 = vunpack.c.l.b16 %v299
        %v336 = vunpack.c.l.b16 %v300
        %v337 = vunpack.c.l.b16 %v301
        %v338 = vunpack.c.l.b16 %v302
        %v339 = vunpack.c.l.b16 %v303
        %v340 = vunpack.c.l.b16 %v304
        %v341 = vunpack.c.l.b16 %v305
        %v342 = vunpack.c.l.b16 %v306
        %v343 = vunpack.c.l.b16 %v307
        %v344 = vunpack.c.l.b16 %v308
        %v345 = vunpack.c.l.b16 %v309
        %v346 = vunpack.c.l.b16 %v310
        %v347 = vunpack.c.l.b16 %v311
        %v348 = vunpack.c.l.b16 %v312
        %v349 = vpack.c.b16 %v334, %v333
        %v350 = vpack.c.b16 %v336, %v335
        %v351 = vpack.c.b16 %v338, %v337
        %v352 = vpack.c.b16 %v340, %v339
        %v353 = vpack.c.b16 %v342, %v341
        %v354 = vpack.c.b16 %v344, %v343
        %v355 = vpack.c.b16 %v346, %v345
        %v356 = vpack.c.b16 %v348, %v347
        %365 = vmatpush.bf16.msra.mxu0 %v356
        %366 = vmatpush.bf16.msra.mxu0 %v355
        %367 = vmatpush.bf16.msra.mxu0 %v354
        %368 = vmatpush.bf16.msra.mxu0 %v353
        %369 = vmatpush.bf16.msra.mxu0 %v352
        %370 = vmatpush.bf16.msra.mxu0 %v351
        %371 = vmatpush.bf16.msra.mxu0 %v350
        %372 = vmatpush.bf16.msra.mxu0 %v349
        %373 = vmatmul.bf16.gmra.mxu0 %v295
        %v374 = vpop.f32.mrf.mxu0
        %v375 = vadd.f32 %v315, %v374
        %v376 = vpop.f32.mrf.mxu0
        %v377 = vadd.f32 %v315, %v376
        %378 = vmatmul.bf16.gmra.mxu0 %v296
        %v379 = vpop.f32.mrf.mxu0
        %v380 = vadd.f32 %v315, %v379
        %v381 = vpop.f32.mrf.mxu0
        %v382 = vadd.f32 %v315, %v381
        %383 = vdwg.mxu0
        %v384 = vxor.u32 %v375, 2147483648
        %v385 = vxor.u32 %v377, 2147483648
        %v386 = vxor.u32 %v380, 2147483648
        %v387 = vxor.u32 %v382, 2147483648
        %v388 = vmul.f32 %v384, 1.442695
        %v389 = vpow.pop %v388
        %v390 = vmul.f32 %v385, 1.442695
        %v391 = vpow.pop %v390
        %v392 = vmul.f32 %v386, 1.442695
        %v393 = vpow.pop %v392
        %v394 = vmul.f32 %v387, 1.442695
        %v395 = vpow.pop %v394
        %v396 = vadd.f32 %v389, 1.0
        %v397 = vadd.f32 %v391, 1.0
        %v398 = vadd.f32 %v393, 1.0
        %v399 = vadd.f32 %v395, 1.0
        %v400 = vrcp.pop %v396
        %v401 = vmul.f32 %v396, %v400
        %v402 = vsub.f32 1.0, %v401
        %v403 = vmul.f32 %v400, %v402
        %v404 = vadd.f32 %v400, %v403
        %vm405 = vweird.f32 %v396
        %vm406 = vweird.f32 %v400
        %vm407 = vmor %vm405, %vm406
        %v408 = vsel %vm407, %v400, %v404
        %v409 = vand.u32 2147483647, %v396
        %vm410 = vcmp.eq.f32.partialorder %v409, 8.507059e+37
        %v411 = vand.u32 %v396, 2147483648
        %v412 = vor.u32 1.1754944e-38, %v411
        %v413 = vsel %vm410, %v412, %v408
        %v414 = vmul.f32 1.0, %v413
        %v415 = vrcp.pop %v397
        %v416 = vmul.f32 %v397, %v415
        %v417 = vsub.f32 1.0, %v416
        %v418 = vmul.f32 %v415, %v417
        %v419 = vadd.f32 %v415, %v418
        %vm420 = vweird.f32 %v397
        %vm421 = vweird.f32 %v415
        %vm422 = vmor %vm420, %vm421
        %v423 = vsel %vm422, %v415, %v419
        %v424 = vand.u32 2147483647, %v397
        %vm425 = vcmp.eq.f32.partialorder %v424, 8.507059e+37
        %v426 = vand.u32 %v397, 2147483648
        %v427 = vor.u32 1.1754944e-38, %v426
        %v428 = vsel %vm425, %v427, %v423
        %v429 = vmul.f32 1.0, %v428
        %v430 = vrcp.pop %v398
        %v431 = vmul.f32 %v398, %v430
        %v432 = vsub.f32 1.0, %v431
        %v433 = vmul.f32 %v430, %v432
        %v434 = vadd.f32 %v430, %v433
        %vm435 = vweird.f32 %v398
        %vm436 = vweird.f32 %v430
        %vm437 = vmor %vm435, %vm436
        %v438 = vsel %vm437, %v430, %v434
        %v439 = vand.u32 2147483647, %v398
        %vm440 = vcmp.eq.f32.partialorder %v439, 8.507059e+37
        %v441 = vand.u32 %v398, 2147483648
        %v442 = vor.u32 1.1754944e-38, %v441
        %v443 = vsel %vm440, %v442, %v438
        %v444 = vmul.f32 1.0, %v443
        %v445 = vrcp.pop %v399
        %v446 = vmul.f32 %v399, %v445
        %v447 = vsub.f32 1.0, %v446
        %v448 = vmul.f32 %v445, %v447
        %v449 = vadd.f32 %v445, %v448
        %vm450 = vweird.f32 %v399
        %vm451 = vweird.f32 %v445
        %vm452 = vmor %vm450, %vm451
        %v453 = vsel %vm452, %v445, %v449
        %v454 = vand.u32 2147483647, %v399
        %vm455 = vcmp.eq.f32.partialorder %v454, 8.507059e+37
        %v456 = vand.u32 %v399, 2147483648
        %v457 = vor.u32 1.1754944e-38, %v456
        %v458 = vsel %vm455, %v457, %v453
        %v459 = vmul.f32 1.0, %v458
        %v460 = vmul.f32 %v375, %v414
        %v461 = vmul.f32 %v377, %v429
        %v462 = vmul.f32 %v380, %v444
        %v463 = vmul.f32 %v382, %v459
        %v464 = vadd.f32 %v291, %v460
        %v465 = vadd.f32 %v292, %v461
        %v466 = vadd.f32 %v293, %v462
        %v467 = vadd.f32 %v294, %v463
        %468 = vst [vmem:[#allocation2] sm:$0xff] %v464
        %469 = vst [vmem:[#allocation2 + $0x8] sm:$0xff] %v465
        %470 = vst [vmem:[#allocation2 + $0x10] sm:$0xff] %v466
        %471 = vst [vmem:[#allocation2 + $0x18] sm:$0xff] %v467
        %p472 = scmp.eq.s32.totalorder %s28, 1
        // Predicated region
        $region49: #{tpu_custom_call.1} parent=31 // pred_check
          %p473 = pneg %p472
        $region50: #{tpu_custom_call.1} parent=31 // pred_check_branch
          %475 = sbr.rel (%p473) target = $region52
        $region51: #{tpu_custom_call.1} parent=31 // pred_region
          %v476 = vpack.c.bf16 %v464, %v464
          %v477 = vpack.c.bf16 %v465, %v465
          %v478 = vpack.c.bf16 %v466, %v466
          %v479 = vpack.c.bf16 %v467, %v467
          %480 = vst [vmem:[%s276] sm:$0xf] %v476
          %481 = vst [vmem:[%s276 + $0x4] sm:$0xf] %v477
          %482 = vst [vmem:[%s276 + $0x8] sm:$0xf] %v478
          %483 = vst [vmem:[%s276 + $0xc] sm:$0xf] %v479
        $region52: #{tpu_custom_call.1} parent=31 // pred_fallthru
          _
        %s484 = sand.u32 %s132, 1
        %s485 = scalar_lea.sflag [#allocation5], %s484
        %s486 = sand.u32 %s132, 1
        %s487 = smul.addr %s486, 16
        %s488 = scalar_lea.vmem [#allocation9], %s487
        // Predicated region
        $region53: #{tpu_custom_call.1} parent=31 // pred_check
          %p489 = pneg %p142
        $region54: #{tpu_custom_call.1} parent=31 // pred_check_branch
          %491 = sbr.rel (%p489) target = $region56
        $region55: #{tpu_custom_call.1} parent=31 // pred_region
          %s492 = smul.u32 4, %s27
          %494 = vsyncadd %s485, 0
          %s495 = smul.addr %s26, 4
          %s496 = sadd.s32 %s492, %s495
          %s497 = smul.addr %s496, 4
          %s498 = scalar_lea.hbm %s3, %s497
          %s499 = sshll.u32 %s488, 4
          %s500 = int_to_ptr.vmem [resolvable:$true] %s499
          %s501 = sshll.u32 %s498, 4
          %s502 = int_to_ptr.hbm [resolvable:$true] %s501
          %507 = dma.vmem_to_hbm [thread:$0]  %s500, 256, %s502, %s485, 64, 64, 4
        $region56: #{tpu_custom_call.1} parent=31 // pred_fallthru
          _
      $region32: #{tpu_custom_call.1} parent=5 // pred_fallthru
        _
      %p508 = scmp.le.s32.totalorder 2, %s16
      // Predicated region
      $region57: #{tpu_custom_call.1} parent=5 // pred_check
        %p509 = pneg %p508
      $region58: #{tpu_custom_call.1} parent=5 // pred_check_branch
        %511 = sbr.rel (%p509) target = $region60
      $region59: #{tpu_custom_call.1} parent=5 // pred_region
        %s512 = ssub.s32 %s16, 2
        // Predicated region
        $region61: #{tpu_custom_call.1} parent=59 // pred_check
          %p513 = pneg %p148
        $region62: #{tpu_custom_call.1} parent=59 // pred_check_branch
          %515 = sbr.rel (%p513) target = $region64
        $region63: #{tpu_custom_call.1} parent=59 // pred_region
          %s516 = sand.u32 %s133, 1
          %s517 = scalar_lea.sflag [#allocation5], %s516
          %s518 = sand.u32 %s133, 1
          %s519 = smul.addr %s518, 16
          %s520 = scalar_lea.vmem [#allocation9], %s519
          %522 = dma.done %s517, 256
        $region64: #{tpu_custom_call.1} parent=59 // pred_fallthru
          _
      $region60: #{tpu_custom_call.1} parent=5 // pred_fallthru
        _
    $region6: #{tpu_custom_call.1} parent=1 // loop_footer
      %s20 = sadd.s32 1, %s16
    $region7: #{tpu_custom_call.1} parent=1 // loop_footer_branch
      %15 = sbr.rel target = $region3
    $region8: #{tpu_custom_call.1} parent=1 // loop_exit
      _
    %523 = vsyncpa [#allocation4], 1
    %s524 = scalar_lea.sflag [#allocation4], 1
    %525 = vsyncpa %s524, 1
    %526 = vsyncpa [#allocation7], 1
    %s527 = scalar_lea.sflag [#allocation7], 1
    %528 = vsyncpa %s527, 1
    %529 = vsyncpa [#allocation5], 1
    %s530 = scalar_lea.sflag [#allocation5], 1
    %531 = vsyncpa %s530, 1

</llo_original>
